<compile_context>
chip_gen: v6e
topology: v6e:2x2x1
jax: 0.10.0
libtpu: 0.0.40
codegen_flags: <defaults>
</compile_context>

<pallas_src>
import jax
import jax.numpy as jnp
from jax.experimental import pallas as pl
from jax.experimental.pallas import tpu as pltpu


def _identity_kernel(x_ref, o_ref):
    # The entire "forward" of BaseCE: pass the tile through unchanged.
    # Real subclasses drop their per-tile compute here.
    o_ref[...] = x_ref[...]


def _sublane_pack(dtype) -> int:
    """Packed sublane count per vreg: 8 for 4-byte, 16 for 2-byte, 32 for 1-byte."""
    itemsize = jnp.dtype(dtype).itemsize
    return {4: 8, 2: 16, 1: 32}.get(itemsize, 8)


def _vmem_capacity_bytes() -> int:
    """Physical VMEM of the current chip; conservative (v7x) fallback."""
    try:
        return int(pltpu.get_tpu_info().vmem_capacity_bytes)
    except Exception:
        return 64 * 1024 * 1024


def _tiling_config():
    """(target_tile_bytes, vmem_limit_bytes) per TPU generation.

    v7x (64 MiB VMEM/TC, ~3.2 TB/s HBM): 8 MiB tiles -> ~32 MiB peak with
    in+out double-buffering, under a 48 MiB scoped limit.
    v5e/v6e (128 MiB VMEM): 16 MiB tiles, 96 MiB scoped limit (also lifts the
    v5e 16 MiB default that would otherwise force shallow buffering).
    """
    vmem = _vmem_capacity_bytes()
    if vmem <= 64 * 1024 * 1024:
        return 8 * 1024 * 1024, 48 * 1024 * 1024
    return 16 * 1024 * 1024, 96 * 1024 * 1024


def _lane_dense_view(x):
    """Flatten to 2-D with a lane-dense (multiple-of-128) last dimension.

    Returns (x2d, pad) where `pad` is the number of trailing padded elements
    (0 on the common path).  Padding keeps the write-back stream unmasked
    (plain vst) instead of masked vst.msk partial stores.
    """
    total = x.size
    flat = x.reshape(total)
    for k in (8, 4, 2, 1):               # prefer 1024, 512, 256, 128 lane width
        cols = 128 * k
        if total % cols == 0:
            return flat.reshape(total // cols, cols), 0
    cols = 128
    pad = (-total) % cols
    flat = jnp.pad(flat, (0, pad))
    return flat.reshape((total + pad) // cols, cols), pad


def _choose_row_tile(rows: int, cols: int, dtype, target_tile_bytes: int) -> int:
    """Row tile: multiple of the packed sublane count, ~target_tile_bytes/tile.

    With input + output double-buffered the peak VMEM is ~4x tile bytes, which
    stays under the per-generation vmem_limit chosen in _tiling_config().
    """
    pack = _sublane_pack(dtype)
    if rows <= pack:
        return rows                        # full-extent rows (valid block shape)
    itemsize = jnp.dtype(dtype).itemsize
    tr = max(pack, (target_tile_bytes // (cols * itemsize)) // pack * pack)
    tr = min(tr, (rows // pack) * pack)    # don't exceed the row count
    return max(tr, pack)


def base_ce_forward(x, *, force_kernel: bool = False):
    """Pallas implementation of (a concrete, no-op) BaseCE.forward.

    Args:
      x: jnp.ndarray of shape (N, C, H, W), any dtype.
      force_kernel: if True, route through the Pallas pass-through kernel
        (the scaffold a real subclass would fill in).  Default False: the
        identity is returned directly — a copy kernel would cost 2x the
        array bytes in HBM traffic plus launch overhead for zero compute.

    Returns:
      jnp.ndarray identical to `x` (same shape, dtype, values).
    """
    if not force_kernel:
        # Highest-value optimization for a pure identity: no kernel at all.
        return x

    orig_shape = x.shape
    target_tile_bytes, vmem_limit = _tiling_config()

    x2d, pad = _lane_dense_view(x)
    rows, cols = x2d.shape
    tr = _choose_row_tile(rows, cols, x.dtype, target_tile_bytes)

    out2d = pl.pallas_call(
        _identity_kernel,
        out_shape=jax.ShapeDtypeStruct((rows, cols), x.dtype),
        grid=(pl.cdiv(rows, tr),),
        in_specs=[pl.BlockSpec((tr, cols), lambda i: (i, 0))],
        out_specs=pl.BlockSpec((tr, cols), lambda i: (i, 0)),
        # NOTE: input_output_aliases={0: 0} intentionally omitted.  It only
        # pays off when the caller donates `x` under jit; otherwise XLA adds
        # a defensive copy of the input (3x instead of 2x HBM traffic).
        compiler_params=pltpu.CompilerParams(
            # Tiles are independent: shard the grid across both TensorCores
            # on v7x; neutral on single-TC v5e/v6e.
            dimension_semantics=("parallel",),
            # Explicit scoped-VMEM limit sized per generation (also lifts the
            # small v5e default so double-buffering of large tiles fits).
            vmem_limit_bytes=vmem_limit,
        ),
    )(x2d)

    if pad:
        out2d = out2d.reshape(-1)[: x.size]
    return out2d.reshape(orig_shape)


if __name__ == "__main__":
    key = jax.random.PRNGKey(0)
    # Small NCHW input consistent with a channel-encoder module.
    x = jax.random.normal(key, (2, 4, 16, 16), dtype=jnp.float32)

    # Default path: identity short-circuit (no kernel launch).
    y_fast = jax.block_until_ready(base_ce_forward(x))

    # Scaffold path: exercise the Pallas pass-through kernel once on TPU.
    y_kernel = jax.block_until_ready(base_ce_forward(x, force_kernel=True))

    assert y_fast.shape == x.shape and y_fast.dtype == x.dtype
    assert y_kernel.shape == x.shape and y_kernel.dtype == x.dtype
    assert bool(jnp.allclose(y_fast, x)), "identity short-circuit mismatch"
    assert bool(jnp.allclose(y_kernel, x)), "identity kernel mismatch"
    print("KERNEL_OK")
</pallas_src>

<mosaic_0001>
module attributes {stable_mosaic.version = 11 : i64} {
  func.func @_identity_kernel(%arg0: i32, %arg1: memref<2x1024xf32, #tpu.memory_space<vmem>>, %arg2: memref<2x1024xf32, #tpu.memory_space<vmem>>) attributes {dimension_semantics = [#tpu.dimension_semantics<parallel>], iteration_bounds = array<i64: 1>, scalar_prefetch = 0 : i64, scratch_operands = 0 : i64, tpu.core_type = #tpu.core_type<tc>, window_params = [{transform_indices = @transform_0, window_bounds = array<i64: 2, 1024>}, {transform_indices = @transform_1, window_bounds = array<i64: 2, 1024>}]} {
    %c0 = arith.constant 0 : index
    %c0_0 = arith.constant 0 : index
    %0 = vector.load %arg1[%c0, %c0_0] : memref<2x1024xf32, #tpu.memory_space<vmem>>, vector<2x1024xf32>
    %c0_1 = arith.constant 0 : index
    %c0_2 = arith.constant 0 : index
    %1 = vector.load %arg2[%c0_1, %c0_2] : memref<2x1024xf32, #tpu.memory_space<vmem>>, vector<2x1024xf32>
    tpu.vector_store %arg2[%c0_1, %c0_2], %0 {strides = array<i32>} : memref<2x1024xf32, #tpu.memory_space<vmem>>, vector<2x1024xf32>,
    return
  }
  func.func @transform_0(%arg0: i32) -> (i32, i32) {
    %c0_i32 = arith.constant 0 : i32
    %c0_i32_0 = arith.constant 0 : i32
    return %arg0, %c0_i32 : i32, i32
  }
  func.func @transform_1(%arg0: i32) -> (i32, i32) {
    %c0_i32 = arith.constant 0 : i32
    %c0_i32_0 = arith.constant 0 : i32
    return %arg0, %c0_i32 : i32, i32
  }
}

</mosaic_0001>

<llo_original>
// kernel: tpu_custom_call.1
$region0: #{tpu_custom_call.1}
  #allocation0 [shape = 'u32[]', space=smem, size = 0x4, offset = 0x4, fixed_abs, tag = 'smem constant byte address 0x4 - core index']
  #allocation1 [shape = 'u32[144,128]{1,0:T(1,128)}', space=vmem, size = 0x12000, scoped, tag = 'internal scratch']
  %s0 = inlined_call_operand.hbm [shape: f32[2,1024], index: 0, kind: input, shape index: {}]
  %s1 = inlined_call_operand.hbm [shape: f32[2,1024], index: 1, kind: output, shape index: {}]
  %s2 = sld [smem:[#allocation0]]
  $region18: #{tpu_custom_call.1} parent=0
    _
  %s4 = ssub.s32 1, %s2
  %s5 = scalar_select 0, %s4, %s2
  $region1: #{tpu_custom_call.1} parent=0
    #allocation2 [shape = 'u8[8192]{0}', space=vmem, size = 0x2000, scoped, tag = 'input window, operand 0, single buffered']
    #allocation3 [shape = 's32[1]{0}', space=sflag, size = 0x4, scoped, tag = 'scoped memory for tpu_custom_call.1']
    #allocation4 [shape = 's32[1]{0}', space=sflag, size = 0x4, scoped, tag = 'scoped memory for tpu_custom_call.1']
    #allocation5 [shape = 'u8[8192]{0}', space=vmem, size = 0x2000, scoped, tag = 'output window, operand 0, single buffered']
    %6 = vsyncpa [#allocation3], 0
    %7 = vsyncpa [#allocation4], 0
    // Predicated region
    $region2: #{tpu_custom_call.1} parent=1 // pred_check
      _
    $region3: #{tpu_custom_call.1} parent=1 // pred_check_branch
      %9 = sbr.rel (0) target = $region5
    $region4: #{tpu_custom_call.1} parent=1 // pred_region
      %s11 = ssub.s32 256, 256
      %12 = vsyncadd [#allocation3], %s11
      %s14 = sshll.u32 [#allocation2], 4
      %s15 = int_to_ptr.vmem [resolvable:$true] %s14
      %17 = dma.hbm_to_vmem [thread:$0]  %s0, 256, %s15, [#allocation3]
    $region5: #{tpu_custom_call.1} parent=1 // pred_fallthru
      _
    // Predicated region
    $region6: #{tpu_custom_call.1} parent=1 // pred_check
      _
    $region7: #{tpu_custom_call.1} parent=1 // pred_check_branch
      %19 = sbr.rel (0) target = $region9
    $region8: #{tpu_custom_call.1} parent=1 // pred_region
      %20 = dma.done [#allocation3], 256
    $region9: #{tpu_custom_call.1} parent=1 // pred_fallthru
      _
    %v21 = vld [vmem:[#allocation2] sm:$0xff]
    %v22 = vld [vmem:[#allocation2 + $0x8] sm:$0xff]
    %23 = vst [vmem:[#allocation5] sm:$0xff] %v21
    %24 = vst [vmem:[#allocation5 + $0x8] sm:$0xff] %v22
    // Predicated region
    $region10: #{tpu_custom_call.1} parent=1 // pred_check
      _
    $region11: #{tpu_custom_call.1} parent=1 // pred_check_branch
      %26 = sbr.rel (0) target = $region13
    $region12: #{tpu_custom_call.1} parent=1 // pred_region
      %s28 = ssub.s32 256, 256
      %29 = vsyncadd [#allocation4], %s28
      %s31 = sshll.u32 [#allocation5], 4
      %s32 = int_to_ptr.vmem [resolvable:$true] %s31
      %34 = dma.vmem_to_hbm [thread:$0]  %s32, 256, %s1, [#allocation4]
    $region13: #{tpu_custom_call.1} parent=1 // pred_fallthru
      _
    // Predicated region
    $region14: #{tpu_custom_call.1} parent=1 // pred_check
      _
    $region15: #{tpu_custom_call.1} parent=1 // pred_check_branch
      %36 = sbr.rel (0) target = $region17
    $region16: #{tpu_custom_call.1} parent=1 // pred_region
      %37 = dma.done [#allocation4], 256
    $region17: #{tpu_custom_call.1} parent=1 // pred_fallthru
      _
    %38 = vsyncpa [#allocation3], 1
    %39 = vsyncpa [#allocation4], 1

</llo_original>
